<compile_context>
chip_gen: v5e
topology: v5e:2x2
jax: 0.10.0
libtpu: 0.0.40
codegen_flags: <defaults>
</compile_context>

<pallas_src>
import functools

import jax
import jax.numpy as jnp
from jax import lax
from jax.experimental import pallas as pl
from jax.experimental.pallas import tpu as pltpu

KERNEL_SIZE = 3


def _patch_embed_kernel(col_ref, z_ref, w_ref, o_ref, *, width):
    # col_ref: (1, thw)        int32  column index c = p % W for every lane
    # z_ref:   (3*C_in, thw)   bf16   centre-column (kw=1) tap values, row = ci*3 + kh
    # w_ref:   (C_out, 9*C_in) bf16   weight, column = kw*(3*C_in) + ci*3 + kh
    # o_ref:   (C_out, thw)           lane-dense output tile (flat H*W on lanes)
    z = z_ref[...]
    # +/-1 lane shifts for the kw taps (static shift -> slice+concat, supported by Mosaic).
    zm = jnp.roll(z, 1, axis=1)    # zm[p] = z[p-1]
    zp = jnp.roll(z, -1, axis=1)   # zp[p] = z[p+1]

    col = col_ref[...]
    is_first = col == 0            # image column 0   -> reflect: use z[p+1]
    is_last = col == (width - 1)   # image column W-1 -> reflect: use z[p-1]
    # Row-aligned tiles => every wrap-around lane of the roll is an image edge column
    # and gets overridden by the reflect fix below, so no halo is needed.
    z_left = jnp.where(is_first, zp, zm)   # kw = 0 taps
    z_right = jnp.where(is_last, zm, zp)   # kw = 2 taps

    x_col = jnp.concatenate([z_left, z, z_right], axis=0)   # (9*C_in, thw)
    o_ref[...] = jnp.dot(w_ref[...], x_col,
                         preferred_element_type=jnp.float32).astype(o_ref.dtype)


def _pick_rows_per_tile(h, w, n_batch, max_lanes=16384, min_lanes=1024):
    """Rows per tile: row-aligned, lane-friendly (thw % 128 == 0 or thw == H*W),
    as large as the lane budget allows, with >= 4 grid steps when possible."""
    divisors = [d for d in range(1, h + 1) if h % d == 0]
    valid = [d for d in divisors if (d * w) % 128 == 0 or d * w == h * w]
    if not valid:
        return h
    under = [d for d in valid if d * w <= max_lanes]
    rows = max(under) if under else min(valid)
    while n_batch * (h // rows) < 4:
        smaller = [d for d in valid if d < rows and d * w >= min_lanes]
        if not smaller:
            break
        rows = max(smaller)
    return rows


def overlap_patch_embed(x_nchw, weight_oihw):
    """Forward of nn.Conv2d(C_in, C_out, k=3, s=1, p=1, padding_mode='reflect', bias=False).

    x_nchw:      (N, C_in, H, W)
    weight_oihw: (C_out, C_in, 3, 3)   (PyTorch conv weight layout)
    returns:     (N, C_out, H, W)
    """
    n, c_in, h, w = x_nchw.shape
    c_out = weight_oihw.shape[0]
    hw = h * w
    k = KERNEL_SIZE * KERNEL_SIZE * c_in

    # ---- wrapper glue: bf16 cast + row-only (kh) taps; single fused XLA producer ----
    x_bf = x_nchw.astype(jnp.bfloat16)
    x_rows = jnp.pad(x_bf, ((0, 0), (0, 0), (1, 1), (0, 0)), mode="reflect")
    z = jnp.stack([x_rows[:, :, kh:kh + h, :] for kh in range(KERNEL_SIZE)], axis=2)
    z = z.reshape(n, c_in * KERNEL_SIZE, hw)                     # row index = ci*3 + kh

    # Weight columns ordered kw-major to match the kernel's [z_left, z, z_right] concat.
    w2 = jnp.transpose(weight_oihw, (0, 3, 1, 2)).reshape(c_out, k).astype(jnp.bfloat16)

    # Per-lane image-column index (drives the left/right reflect fix in-kernel).
    col_ids = (lax.iota(jnp.int32, hw) % w).reshape(1, hw)

    rows = _pick_rows_per_tile(h, w, n)
    thw = rows * w
    grid = (n, hw // thw)

    out = pl.pallas_call(
        functools.partial(_patch_embed_kernel, width=w),
        out_shape=jax.ShapeDtypeStruct((n, c_out, hw), x_nchw.dtype),
        grid=grid,
        in_specs=[
            pl.BlockSpec((1, thw), lambda i, j: (0, j)),
            pl.BlockSpec((None, c_in * KERNEL_SIZE, thw), lambda i, j: (i, 0, j)),
            pl.BlockSpec((c_out, k), lambda i, j: (0, 0)),
        ],
        out_specs=pl.BlockSpec((None, c_out, thw), lambda i, j: (i, 0, j)),
        compiler_params=pltpu.CompilerParams(
            dimension_semantics=("parallel", "parallel")),
    )(col_ids, z, w2)

    # Lane-dense kernel output -> NCHW is a free reshape (no transpose).
    return out.reshape(n, c_out, h, w)


if __name__ == "__main__":
    key = jax.random.PRNGKey(0)
    k_x, k_w = jax.random.split(key)

    # Shapes consistent with OverlapPatchEmbed(in_c=3, embed_dim=48).
    n, c_in, h, w = 2, 3, 16, 16
    c_out = 48

    x = jax.random.normal(k_x, (n, c_in, h, w), dtype=jnp.float32)
    weight = jax.random.normal(
        k_w, (c_out, c_in, KERNEL_SIZE, KERNEL_SIZE), dtype=jnp.float32) * 0.05

    # The kernel computes with bf16 inputs (f32 accumulate); round the test inputs to
    # bf16 up front so the reference comparison is tight (only accumulation-order noise).
    x = x.astype(jnp.bfloat16).astype(jnp.float32)
    weight = weight.astype(jnp.bfloat16).astype(jnp.float32)

    out = jax.block_until_ready(jax.jit(overlap_patch_embed)(x, weight))
    assert out.shape == (n, c_out, h, w), out.shape

    # Reference: reflect-pad + VALID conv (matches PyTorch reflect-padded Conv2d).
    x_pad = jnp.pad(x, ((0, 0), (0, 0), (1, 1), (1, 1)), mode="reflect")
    ref = lax.conv_general_dilated(
        x_pad, weight, window_strides=(1, 1), padding="VALID",
        dimension_numbers=("NCHW", "OIHW", "NCHW"),
        precision=lax.Precision.HIGHEST)
    max_err = float(jnp.max(jnp.abs(out - ref)))
    assert jnp.allclose(out, ref, atol=1e-3, rtol=1e-3), max_err

    print("KERNEL_OK")
</pallas_src>

<mosaic_0001>
module attributes {stable_mosaic.version = 11 : i64} {
  func.func @_patch_embed_kernel(%arg0: i32, %arg1: i32, %arg2: memref<1x256xi32, #tpu.memory_space<vmem>>, %arg3: memref<1x9x256xbf16, #tpu.memory_space<vmem>>, %arg4: memref<48x27xbf16, #tpu.memory_space<vmem>>, %arg5: memref<1x48x256xf32, #tpu.memory_space<vmem>>) attributes {dimension_semantics = [#tpu.dimension_semantics<parallel>, #tpu.dimension_semantics<parallel>], iteration_bounds = array<i64: 2, 1>, scalar_prefetch = 0 : i64, scratch_operands = 0 : i64, tpu.core_type = #tpu.core_type<tc>, window_params = [{transform_indices = @transform_0, window_bounds = array<i64: 1, 256>}, {transform_indices = @transform_1, window_bounds = array<i64: 1, 9, 256>}, {pipeline_mode = #tpu.pipeline_mode<synchronous>, transform_indices = @transform_2, window_bounds = array<i64: 48, 27>}, {transform_indices = @transform_3, window_bounds = array<i64: 1, 48, 256>}]} {
    %c0 = arith.constant 0 : index
    %c0_0 = arith.constant 0 : index
    %c0_1 = arith.constant 0 : index
    %0 = vector.load %arg3[%c0, %c0_0, %c0_1] : memref<1x9x256xbf16, #tpu.memory_space<vmem>>, vector<1x9x256xbf16>
    %1 = vector.shape_cast %0 : vector<1x9x256xbf16> to vector<9x256xbf16>
    %2 = vector.extract_strided_slice %1 {offsets = [0, 255], sizes = [9, 1], strides = [1, 1]} : vector<9x256xbf16> to vector<9x1xbf16>
    %3 = vector.extract_strided_slice %1 {offsets = [0, 0], sizes = [9, 255], strides = [1, 1]} : vector<9x256xbf16> to vector<9x255xbf16>
    %4 = tpu.concatenate %2, %3 in 1 : vector<9x1xbf16>, vector<9x255xbf16> -> vector<9x256xbf16>
    %5 = vector.extract_strided_slice %1 {offsets = [0, 1], sizes = [9, 255], strides = [1, 1]} : vector<9x256xbf16> to vector<9x255xbf16>
    %6 = vector.extract_strided_slice %1 {offsets = [0, 0], sizes = [9, 1], strides = [1, 1]} : vector<9x256xbf16> to vector<9x1xbf16>
    %7 = tpu.concatenate %5, %6 in 1 : vector<9x255xbf16>, vector<9x1xbf16> -> vector<9x256xbf16>
    %c0_2 = arith.constant 0 : index
    %c0_3 = arith.constant 0 : index
    %8 = vector.load %arg2[%c0_2, %c0_3] : memref<1x256xi32, #tpu.memory_space<vmem>>, vector<1x256xi32>
    %c0_i32 = arith.constant 0 : i32
    %9 = vector.broadcast %c0_i32 : i32 to vector<1x256xi32>
    %10 = arith.cmpi eq, %8, %9 : vector<1x256xi32>
    %c15_i32 = arith.constant 15 : i32
    %11 = vector.broadcast %c15_i32 : i32 to vector<1x256xi32>
    %12 = arith.cmpi eq, %8, %11 : vector<1x256xi32>
    %13 = vector.shape_cast %10 : vector<1x256xi1> to vector<1x256xi1>
    %14 = vector.broadcast %13 : vector<1x256xi1> to vector<9x256xi1>
    %15 = arith.select %14, %7, %4 : vector<9x256xi1>, vector<9x256xbf16>
    %16 = vector.shape_cast %12 : vector<1x256xi1> to vector<1x256xi1>
    %17 = vector.broadcast %16 : vector<1x256xi1> to vector<9x256xi1>
    %18 = arith.select %17, %4, %7 : vector<9x256xi1>, vector<9x256xbf16>
    %19 = tpu.concatenate %15, %1, %18 in 0 : vector<9x256xbf16>, vector<9x256xbf16>, vector<9x256xbf16> -> vector<27x256xbf16>
    %c0_4 = arith.constant 0 : index
    %c0_5 = arith.constant 0 : index
    %20 = vector.load %arg4[%c0_4, %c0_5] : memref<48x27xbf16, #tpu.memory_space<vmem>>, vector<48x27xbf16>
    %cst = arith.constant dense<0.000000e+00> : vector<48x256xf32>
    %21 = tpu.matmul %20, %19, %cst {dimension_numbers = #tpu.dot_dimension_numbers<[1], [0], [0], [1], [0, 0, 1, 1], [], []>} : vector<48x27xbf16>, vector<27x256xbf16>, vector<48x256xf32> -> vector<48x256xf32>
    %c0_6 = arith.constant 0 : index
    %c0_7 = arith.constant 0 : index
    %c0_8 = arith.constant 0 : index
    %22 = vector.load %arg5[%c0_6, %c0_7, %c0_8] : memref<1x48x256xf32, #tpu.memory_space<vmem>>, vector<1x48x256xf32>
    %23 = vector.shape_cast %22 : vector<1x48x256xf32> to vector<48x256xf32>
    %24 = vector.shape_cast %21 : vector<48x256xf32> to vector<1x48x256xf32>
    tpu.vector_store %arg5[%c0_6, %c0_7, %c0_8], %24 {strides = array<i32>} : memref<1x48x256xf32, #tpu.memory_space<vmem>>, vector<1x48x256xf32>,
    return
  }
  func.func @transform_0(%arg0: i32, %arg1: i32) -> (i32, i32) {
    %c0_i32 = arith.constant 0 : i32
    %c0_i32_0 = arith.constant 0 : i32
    return %c0_i32, %arg1 : i32, i32
  }
  func.func @transform_1(%arg0: i32, %arg1: i32) -> (i32, i32, i32) {
    %c0_i32 = arith.constant 0 : i32
    %c0_i32_0 = arith.constant 0 : i32
    return %arg0, %c0_i32, %arg1 : i32, i32, i32
  }
  func.func @transform_2(%arg0: i32, %arg1: i32) -> (i32, i32) {
    %c0_i32 = arith.constant 0 : i32
    %c0_i32_0 = arith.constant 0 : i32
    %c0_i32_1 = arith.constant 0 : i32
    return %c0_i32, %c0_i32_0 : i32, i32
  }
  func.func @transform_3(%arg0: i32, %arg1: i32) -> (i32, i32, i32) {
    %c0_i32 = arith.constant 0 : i32
    %c0_i32_0 = arith.constant 0 : i32
    return %arg0, %c0_i32, %arg1 : i32, i32, i32
  }
}

</mosaic_0001>

<llo_original>
// kernel: overlap_patch_embed.1
$region0: #{overlap_patch_embed.1}
  #allocation0 [shape = 'u32[]', space=smem, size = 0x4, offset = 0x4, fixed_abs, tag = 'smem constant byte address 0x4 - core index']
  #allocation1 [shape = 'u32[72,128]{1,0:T(1,128)}', space=vmem, size = 0x9000, scoped, tag = 'internal scratch']
  %s0 = inlined_call_operand.vmem [shape: s32[1,256], index: 0, kind: input, shape index: {}]
  %s1 = inlined_call_operand.vmem [shape: bf16[2,9,256], index: 1, kind: input, shape index: {}]
  %s2 = inlined_call_operand.vmem [shape: bf16[48,27], index: 2, kind: input, shape index: {}]
  %s3 = inlined_call_operand.vmem [shape: f32[2,48,256], index: 3, kind: output, shape index: {}]
  %s4 = sld [smem:[#allocation0]]
  $region45: #{overlap_patch_embed.1} parent=0
    _
  %s6 = ssub.s32 1, %s4
  %s7 = scalar_select 0, %s6, %s4
  loop: start=0, step=1, limit=4
  $region2: #{overlap_patch_embed.1} parent=0 // loop_pre_header
    _
  $region3: #{overlap_patch_embed.1} parent=0 // loop_header
    %s9 = sphi 0, %s13
    %p10 = scmp.ge.s32.totalorder %s9, 4
    %s16 = sphi 0, %s28
    %s17 = sphi 0, %s24
    %s18 = sphi 0, %s16
    %s19 = sphi 0, %s17
    %s20 = sphi 0, %s18
    %s21 = sphi 0, %s19
    %s31 = sphi 0, %s33
    %s34 = sphi 0, %s31
    %s35 = sphi 0, %s34
    %s51 = sphi 0, %s35
    %s59 = sphi 0, %s61
    %s62 = sphi 0, %s59
    %s63 = sphi 0, %s62
    %s79 = sphi 0, %s63
    %s83 = sphi 0, %s83
    %s85 = sphi 0, %s83
    %s86 = sphi 0, %s85
    %s100 = sphi 0, %s86
    %s108 = sphi 0, %s110
    %s111 = sphi 0, %s108
    %s112 = sphi 0, %s111
    %s128 = sphi 0, %s112
  $region4: #{overlap_patch_embed.1} parent=0 // loop_header_branch
    %12 = sbr.rel (%p10) target = $region8
  $region5: #{overlap_patch_embed.1} parent=0 // loop_body
    %s14 = ssub.s32 %s9, 1
    %s15 = ssub.s32 %s9, 2
    %s22 = sadd.s32 1, %s17
    %p23 = scmp.ge.s32.totalorder %s22, 1
    %s24 = scalar_select %p23, 0, %s22
    %s25 = sadd.s32 1, %s16
    %s26 = scalar_select %p23, %s25, %s16
    %p27 = scmp.ge.s32.totalorder %s26, 2
    %s28 = scalar_select %p27, 0, %s26
    %s29 = ssub.s32 %s17, %s24
    %p30 = scmp.eq.s32.totalorder %s29, 0
    %s32 = sadd.s32 %s31, 1
    %s33 = scalar_select %p30, %s31, %s32
    %p36 = pneg %p30
    %p37 = scmp.eq.s32.totalorder %s9, 1
    %p38 = por %p36, %p37
    %p39 = scmp.ne.s32.totalorder %s31, %s34
    %p40 = scmp.eq.s32.totalorder %s9, 0
    %p41 = por %p39, %p40
    %p42 = scmp.ne.s32.totalorder %s31, %s34
    %p43 = scmp.eq.s32.totalorder %s14, 1
    %p44 = por %p42, %p43
    %p45 = scmp.ne.s32.totalorder %s34, %s35
    %p46 = scmp.eq.s32.totalorder %s14, 0
    %p47 = por %p45, %p46
    %p48 = scmp.ne.s32.totalorder %s34, %s35
    %p49 = scmp.eq.s32.totalorder %s15, 1
    %p50 = por %p48, %p49
    %p52 = scmp.ne.s32.totalorder %s35, %s51
    %p53 = scmp.eq.s32.totalorder %s15, 0
    %p54 = por %p52, %p53
    %s55 = ssub.s32 %s16, %s28
    %s56 = ssub.s32 %s17, %s24
    %s57 = sor.u32 %s55, %s56
    %p58 = scmp.eq.s32.totalorder %s57, 0
    %s60 = sadd.s32 %s59, 1
    %s61 = scalar_select %p58, %s59, %s60
    %p64 = pneg %p58
    %p65 = scmp.eq.s32.totalorder %s9, 1
    %p66 = por %p64, %p65
    %p67 = scmp.ne.s32.totalorder %s59, %s62
    %p68 = scmp.eq.s32.totalorder %s9, 0
    %p69 = por %p67, %p68
    %p70 = scmp.ne.s32.totalorder %s59, %s62
    %p71 = scmp.eq.s32.totalorder %s14, 1
    %p72 = por %p70, %p71
    %p73 = scmp.ne.s32.totalorder %s62, %s63
    %p74 = scmp.eq.s32.totalorder %s14, 0
    %p75 = por %p73, %p74
    %p76 = scmp.ne.s32.totalorder %s62, %s63
    %p77 = scmp.eq.s32.totalorder %s15, 1
    %p78 = por %p76, %p77
    %p80 = scmp.ne.s32.totalorder %s63, %s79
    %p81 = scmp.eq.s32.totalorder %s15, 0
    %p82 = por %p80, %p81
    %s84 = sadd.s32 %s83, 1
    %p87 = scmp.eq.s32.totalorder %s9, 1
    %p88 = scmp.ne.s32.totalorder %s83, %s85
    %p89 = scmp.eq.s32.totalorder %s9, 0
    %p90 = por %p88, %p89
    %p91 = scmp.ne.s32.totalorder %s83, %s85
    %p92 = scmp.eq.s32.totalorder %s14, 1
    %p93 = por %p91, %p92
    %p94 = scmp.ne.s32.totalorder %s85, %s86
    %p95 = scmp.eq.s32.totalorder %s14, 0
    %p96 = por %p94, %p95
    %p97 = scmp.ne.s32.totalorder %s85, %s86
    %p98 = scmp.eq.s32.totalorder %s15, 1
    %p99 = por %p97, %p98
    %p101 = scmp.ne.s32.totalorder %s86, %s100
    %p102 = scmp.eq.s32.totalorder %s15, 0
    %p103 = por %p101, %p102
    %s104 = ssub.s32 %s16, %s28
    %s105 = ssub.s32 %s17, %s24
    %s106 = sor.u32 %s104, %s105
    %p107 = scmp.eq.s32.totalorder %s106, 0
    %s109 = sadd.s32 %s108, 1
    %s110 = scalar_select %p107, %s108, %s109
    %p113 = pneg %p107
    %p114 = scmp.eq.s32.totalorder %s9, 1
    %p115 = por %p113, %p114
    %p116 = scmp.ne.s32.totalorder %s108, %s111
    %p117 = scmp.eq.s32.totalorder %s9, 0
    %p118 = por %p116, %p117
    %p119 = scmp.ne.s32.totalorder %s108, %s111
    %p120 = scmp.eq.s32.totalorder %s14, 1
    %p121 = por %p119, %p120
    %p122 = scmp.ne.s32.totalorder %s111, %s112
    %p123 = scmp.eq.s32.totalorder %s14, 0
    %p124 = por %p122, %p123
    %p125 = scmp.ne.s32.totalorder %s111, %s112
    %p126 = scmp.eq.s32.totalorder %s15, 1
    %p127 = por %p125, %p126
    %p129 = scmp.ne.s32.totalorder %s112, %s128
    %p130 = scmp.eq.s32.totalorder %s15, 0
    %p131 = por %p129, %p130
    %p132 = scmp.le.s32.totalorder 1, %s9
    %p133 = scmp.lt.s32.totalorder %s9, 3
    %p134 = pnand %p132, %p133
    %p135 = pneg %p134
    // Predicated region
    $region9: #{overlap_patch_embed.1} parent=5 // pred_check
      _
    $region10: #{overlap_patch_embed.1} parent=5 // pred_check_branch
      %137 = sbr.rel (%p134) target = $region12
    $region11: #{overlap_patch_embed.1} parent=5 // pred_region
      %s138 = ssub.s32 %s9, 1
      // Predicated region
      $region13: #{overlap_patch_embed.1} parent=11 // pred_check
        %p139 = pneg %p47
      $region14: #{overlap_patch_embed.1} parent=11 // pred_check_branch
        %141 = sbr.rel (%p139) target = $region16
      $region15: #{overlap_patch_embed.1} parent=11 // pred_region
        %s142 = smul.u32 2, %s19
        %p143 = scmp.lt.s32.totalorder %s142, 1
        %s144 = scalar_select %p143, %s142, 1
        %s145 = scalar_lea.vmem %s0, %s144
        %s146 = smul.u32 2, %s19
      $region16: #{overlap_patch_embed.1} parent=11 // pred_fallthru
        _
      // Predicated region
      $region17: #{overlap_patch_embed.1} parent=11 // pred_check
        %p147 = pneg %p96
      $region18: #{overlap_patch_embed.1} parent=11 // pred_check_branch
        %149 = sbr.rel (%p147) target = $region20
      $region19: #{overlap_patch_embed.1} parent=11 // pred_region
        _
      $region20: #{overlap_patch_embed.1} parent=11 // pred_fallthru
        _
    $region12: #{overlap_patch_embed.1} parent=5 // pred_fallthru
      _
    %p150 = scmp.lt.s32.totalorder %s9, 2
    // Predicated region
    $region21: #{overlap_patch_embed.1} parent=5 // pred_check
      %p151 = pneg %p150
    $region22: #{overlap_patch_embed.1} parent=5 // pred_check_branch
      %153 = sbr.rel (%p151) target = $region24
    $region23: #{overlap_patch_embed.1} parent=5 // pred_region
      // Predicated region
      $region25: #{overlap_patch_embed.1} parent=23 // pred_check
        %p154 = pneg %p69
      $region26: #{overlap_patch_embed.1} parent=23 // pred_check_branch
        %156 = sbr.rel (%p154) target = $region28
      $region27: #{overlap_patch_embed.1} parent=23 // pred_region
        %s157 = smul.u32 2, %s17
        %p158 = scmp.lt.s32.totalorder %s16, 1
        %s159 = scalar_select %p158, %s16, 1
        %p160 = scmp.lt.s32.totalorder %s157, 1
        %s161 = scalar_select %p160, %s157, 1
        %s162 = smul.addr %s159, 4
        %s163 = sadd.s32 %s161, %s162
        %s164 = smul.addr %s163, 4
        %s165 = scalar_lea.vmem %s1, %s164
        %s166 = smul.u32 2, %s17
      $region28: #{overlap_patch_embed.1} parent=23 // pred_fallthru
        _
    $region24: #{overlap_patch_embed.1} parent=5 // pred_fallthru
      _
    %p167 = scmp.le.s32.totalorder 1, %s9
    %p168 = scmp.lt.s32.totalorder %s9, 3
    %p169 = pnand %p167, %p168
    %p170 = pneg %p169
    // Predicated region
    $region29: #{overlap_patch_embed.1} parent=5 // pred_check
      _
    $region30: #{overlap_patch_embed.1} parent=5 // pred_check_branch
      %172 = sbr.rel (%p169) target = $region32
    $region31: #{overlap_patch_embed.1} parent=5 // pred_region
      %s173 = ssub.s32 %s9, 1
      %s174 = smul.u32 2, %s19
      %p175 = scmp.lt.s32.totalorder %s174, 1
      %s176 = scalar_select %p175, %s174, 1
      %s177 = scalar_lea.vmem %s0, %s176
      %p178 = pneg %p47
      %p179 = pneg %p44
      %s180 = smul.u32 2, %s19
      %p181 = scmp.lt.s32.totalorder %s18, 1
      %s182 = scalar_select %p181, %s18, 1
      %p183 = scmp.lt.s32.totalorder %s180, 1
      %s184 = scalar_select %p183, %s180, 1
      %s185 = smul.addr %s182, 4
      %s186 = sadd.s32 %s184, %s185
      %s187 = smul.addr %s186, 4
      %s188 = scalar_lea.vmem %s1, %s187
      %p189 = pneg %p75
      %p190 = pneg %p72
      %p191 = pneg %p96
      %p192 = pneg %p93
      %p193 = pneg %p124
      %p194 = pneg %p121
      %s195 = smul.u32 2, %s19
      %p196 = scmp.lt.s32.totalorder %s18, 1
      %s197 = scalar_select %p196, %s18, 1
      %p198 = scmp.lt.s32.totalorder %s195, 1
      %s199 = scalar_select %p198, %s195, 1
      %s200 = smul.addr %s197, 12
      %s201 = sadd.s32 %s199, %s200
      %s202 = smul.addr %s201, 8
      %s203 = scalar_lea.vmem %s3, %s202
      %s204 = smul.u32 2, %s19
      %p205 = scmp.lt.s32.totalorder %s204, 1
      %s206 = scalar_select %p205, %s204, 1
      %s207 = scalar_lea.vmem %s0, %s206
      %s208 = smul.u32 2, %s19
      %s209 = smul.u32 2, %s19
      %p210 = scmp.lt.s32.totalorder %s18, 1
      %s211 = scalar_select %p210, %s18, 1
      %p212 = scmp.lt.s32.totalorder %s209, 1
      %s213 = scalar_select %p212, %s209, 1
      %s214 = smul.addr %s211, 4
      %s215 = sadd.s32 %s213, %s214
      %s216 = smul.addr %s215, 4
      %s217 = scalar_lea.vmem %s1, %s216
      %s218 = smul.u32 2, %s19
      %s219 = smul.u32 2, %s19
      %p220 = scmp.lt.s32.totalorder %s18, 1
      %s221 = scalar_select %p220, %s18, 1
      %p222 = scmp.lt.s32.totalorder %s219, 1
      %s223 = scalar_select %p222, %s219, 1
      %s224 = smul.addr %s221, 12
      %s225 = sadd.s32 %s223, %s224
      %s226 = smul.addr %s225, 8
      %s227 = scalar_lea.vmem %s3, %s226
      %s228 = smul.u32 2, %s19
      %v232 = vld [vmem:[%s217] sm:$0xff]
      %v233 = vld [vmem:[%s217 + $0x8] sm:$0x11]
      %v236 = vunpack.c.h.b16 %v232
      %v237 = vunpack.c.h.b16 %v233
      %v238 = vpack.c.b16 %v237, %v236
      %239 = vrot.lane.b32.xlu0 %v238, 1
      %v240 = vpop.permute.xlu0 %239
      %v241 = vunpack.c.l.b16 %v232
      %v242 = vunpack.c.l.b16 %v233
      %v243 = vpack.c.b16 %v242, %v241
      %244 = vrot.lane.b32.xlu0 %v243, 1
      %v245 = vpop.permute.xlu0 %244
      %vm246 = vcmask 7168
      %v247 = vsel %vm246, %v245, %v240
      %vm249 = vcmask 7168
      %v252 = vsel %vm249, %v240, %v245
      %254 = vrot.lane.b32.xlu0 %v243, 127
      %v255 = vpop.permute.xlu0 %254
      %256 = vrot.lane.b32.xlu0 %v238, 127
      %v257 = vpop.permute.xlu0 %256
      %vm258 = vcmask 1039360
      %v259 = vsel %vm258, %v255, %v257
      %vm261 = vcmask 1039360
      %v264 = vsel %vm261, %v257, %v255
      %v266 = vld [vmem:[%s207] sm:$0x3]
      %vm267 = vcmp.eq.s32.totalorder %v266, 0
      %vm268 = vcmp.eq.s32.totalorder %v266, 15
      %v269 = vsel %vm267, 1, 0
      %v270 = vperm.slane %v269, 0
      %v271 = vperm.slane %v269, 1
      %vm272 = vcmp.eq.s32.totalorder %v270, 1
      %vm273 = vcmp.eq.s32.totalorder %v271, 1
      %vm274 = vmpackc.low %vm273, %vm272
      %v275 = vsel %vm274, 65537, 0
      %v276 = vperm.slane %v275, 0
      %v277 = vperm.slane %v275, 4
      %v278 = vunpack.c.l.b16 %v276
      %v279 = vunpack.c.h.b16 %v276
      %v280 = vunpack.c.l.b16 0
      %v281 = vunpack.c.h.b16 0
      %vm282 = vcmp.ne.s32.totalorder %v278, %v280
      %vm283 = vcmp.ne.s32.totalorder %v279, %v281
      %vm284 = vmpackc.low %vm283, %vm282
      %v285 = vunpack.c.l.b16 %v277
      %v286 = vunpack.c.h.b16 %v277
      %v287 = vunpack.c.l.b16 0
      %v288 = vunpack.c.h.b16 0
      %vm289 = vcmp.ne.s32.totalorder %v285, %v287
      %vm290 = vcmp.ne.s32.totalorder %v286, %v288
      %vm291 = vmpackc.low %vm290, %vm289
      %v292 = vsel %vm284, %v259, %v252
      %v293 = vsel %vm291, %v264, %v247
      %v294 = vsel %vm268, 1, 0
      %v295 = vperm.slane %v294, 0
      %v296 = vperm.slane %v294, 1
      %vm297 = vcmp.eq.s32.totalorder %v295, 1
      %vm298 = vcmp.eq.s32.totalorder %v296, 1
      %vm299 = vmpackc.low %vm298, %vm297
      %v300 = vsel %vm299, 65537, 0
      %v301 = vperm.slane %v300, 0
      %v302 = vperm.slane %v300, 4
      %v303 = vunpack.c.l.b16 %v301
      %v304 = vunpack.c.h.b16 %v301
      %v305 = vunpack.c.l.b16 0
      %v306 = vunpack.c.h.b16 0
      %vm307 = vcmp.ne.s32.totalorder %v303, %v305
      %vm308 = vcmp.ne.s32.totalorder %v304, %v306
      %vm309 = vmpackc.low %vm308, %vm307
      %v310 = vunpack.c.l.b16 %v302
      %v311 = vunpack.c.h.b16 %v302
      %v312 = vunpack.c.l.b16 0
      %v313 = vunpack.c.h.b16 0
      %vm314 = vcmp.ne.s32.totalorder %v310, %v312
      %vm315 = vcmp.ne.s32.totalorder %v311, %v313
      %vm316 = vmpackc.low %vm315, %vm314
      %v317 = vsel %vm309, %v252, %v259
      %v318 = vsel %vm316, %v247, %v264
      %v320 = vshrl.u32 %v243, 16
      %v322 = vrot.slane %v320, 3
      %v323 = vshll.u32 %v243, 16
      %v325 = vrot.slane %v323, 4
      %v326 = vor.u32 %v322, %v325
      %v328 = vshrl.u32 %v238, 16
      %v330 = vrot.slane %v328, 3
      %v331 = vshll.u32 %v238, 16
      %v333 = vrot.slane %v331, 4
      %v334 = vor.u32 %v330, %v333
      %v339 = vrot.slane %v317, 7
      %v340 = vrot.slane %v318, 7
      %vm341 = vcmask 1044480
      %vm342 = vsmask.f32 4352
      %vm343 = vmand %vm341, %vm342
      %v344 = vsel %vm343, %v292, %v326
      %v345 = vsel %vm343, %v293, %v334
      %vm346 = vcmask 1040384
      %v349 = vsel %vm346, %v326, %v339
      %v352 = vsel %vm346, %v334, %v340
      %v353 = vld [vmem:[%s2] sm:$0xf]
      %v354 = vld [vmem:[%s2 + $0x4] sm:$0xf]
      %v355 = vld [vmem:[%s2 + $0x8] sm:$0xf]
      %v356 = vld [vmem:[%s2 + $0xc] sm:$0xf]
      %v357 = vld [vmem:[%s2 + $0x10] sm:$0xf]
      %v358 = vld [vmem:[%s2 + $0x14] sm:$0xf]
      %v365 = vunpack.c.l.b16 %v353
      %v366 = vunpack.c.l.b16 %v354
      %v367 = vunpack.c.l.b16 %v355
      %v368 = vunpack.c.l.b16 %v356
      %v369 = vunpack.c.l.b16 %v357
      %v370 = vunpack.c.l.b16 %v358
      %v371 = vpack.c.b16 %v366, %v365
      %v372 = vpack.c.b16 %v368, %v367
      %v373 = vpack.c.b16 %v370, %v369
      %vm374 = vcmask 220160
      %v376 = vsel %vm374, %v371, 0
      %v379 = vsel %vm374, %v372, 0
      %v382 = vsel %vm374, %v373, 0
      %vm384 = vcmask 1044480
      %vm385 = vcmask 1045504
      %v386 = vsel %vm384, 4294967295, 65535
      %v387 = vsel %vm385, %v386, 0
      %v388 = vand.u32 %v349, %v387
      %v390 = vand.u32 %v352, %v387
      %392 = vmatpush.bf16.msra.mxu0 0
      %393 = vmatpush.bf16.msra.mxu0 0
      %394 = vmatpush.bf16.msra.mxu0 0
      %395 = vmatpush.bf16.msra.mxu0 0
      %396 = vmatpush.bf16.msra.mxu0 0
      %397 = vmatpush.bf16.msra.mxu0 0
      %398 = vmatpush.bf16.msra.mxu0 %v388
      %399 = vmatpush.bf16.msra.mxu0 %v344
      %400 = vmatmul.bf16.gmra.mxu0 %v376
      %v401 = vpop.f32.mrf.mxu0
      %v402 = vadd.f32 0.0, %v401
      %v403 = vpop.f32.mrf.mxu0
      %v404 = vadd.f32 0.0, %v403
      %405 = vmatmul.bf16.gmra.mxu0 %v379
      %v406 = vpop.f32.mrf.mxu0
      %v407 = vadd.f32 0.0, %v406
      %v408 = vpop.f32.mrf.mxu0
      %v409 = vadd.f32 0.0, %v408
      %410 = vmatmul.bf16.gmra.mxu0 %v382
      %v411 = vpop.f32.mrf.mxu0
      %v412 = vadd.f32 0.0, %v411
      %v413 = vpop.f32.mrf.mxu0
      %v414 = vadd.f32 0.0, %v413
      %415 = vdwg.mxu0
      %416 = vmatpush.bf16.msra.mxu0 0
      %417 = vmatpush.bf16.msra.mxu0 0
      %418 = vmatpush.bf16.msra.mxu0 0
      %419 = vmatpush.bf16.msra.mxu0 0
      %420 = vmatpush.bf16.msra.mxu0 0
      %421 = vmatpush.bf16.msra.mxu0 0
      %422 = vmatpush.bf16.msra.mxu0 %v390
      %423 = vmatpush.bf16.msra.mxu0 %v345
      %424 = vmatmul.bf16.gmra.mxu0 %v376
      %v425 = vpop.f32.mrf.mxu0
      %v426 = vadd.f32 0.0, %v425
      %v427 = vpop.f32.mrf.mxu0
      %v428 = vadd.f32 0.0, %v427
      %429 = vmatmul.bf16.gmra.mxu0 %v379
      %v430 = vpop.f32.mrf.mxu0
      %v431 = vadd.f32 0.0, %v430
      %v432 = vpop.f32.mrf.mxu0
      %v433 = vadd.f32 0.0, %v432
      %434 = vmatmul.bf16.gmra.mxu0 %v382
      %v435 = vpop.f32.mrf.mxu0
      %v436 = vadd.f32 0.0, %v435
      %v437 = vpop.f32.mrf.mxu0
      %v438 = vadd.f32 0.0, %v437
      %439 = vdwg.mxu0
      %440 = vst [vmem:[%s227] sm:$0xff] %v402
      %441 = vst [vmem:[%s227 + $0x8] sm:$0xff] %v426
      %442 = vst [vmem:[%s227 + $0x10] sm:$0xff] %v404
      %443 = vst [vmem:[%s227 + $0x18] sm:$0xff] %v428
      %444 = vst [vmem:[%s227 + $0x20] sm:$0xff] %v407
      %445 = vst [vmem:[%s227 + $0x28] sm:$0xff] %v431
      %446 = vst [vmem:[%s227 + $0x30] sm:$0xff] %v409
      %447 = vst [vmem:[%s227 + $0x38] sm:$0xff] %v433
      %448 = vst [vmem:[%s227 + $0x40] sm:$0xff] %v412
      %449 = vst [vmem:[%s227 + $0x48] sm:$0xff] %v436
      %450 = vst [vmem:[%s227 + $0x50] sm:$0xff] %v414
      %451 = vst [vmem:[%s227 + $0x58] sm:$0xff] %v438
      %s452 = smul.u32 2, %s19
      %p453 = scmp.lt.s32.totalorder %s18, 1
      %s454 = scalar_select %p453, %s18, 1
      %p455 = scmp.lt.s32.totalorder %s452, 1
      %s456 = scalar_select %p455, %s452, 1
      %s457 = smul.addr %s454, 12
      %s458 = sadd.s32 %s456, %s457
      %s459 = smul.addr %s458, 8
      %s460 = scalar_lea.vmem %s3, %s459
      // Predicated region
      $region33: #{overlap_patch_embed.1} parent=31 // pred_check
        %p461 = pneg %p121
      $region34: #{overlap_patch_embed.1} parent=31 // pred_check_branch
        %463 = sbr.rel (%p461) target = $region36
      $region35: #{overlap_patch_embed.1} parent=31 // pred_region
        %s464 = smul.u32 2, %s19
      $region36: #{overlap_patch_embed.1} parent=31 // pred_fallthru
        _
    $region32: #{overlap_patch_embed.1} parent=5 // pred_fallthru
      _
    %p465 = scmp.le.s32.totalorder 2, %s9
    // Predicated region
    $region37: #{overlap_patch_embed.1} parent=5 // pred_check
      %p466 = pneg %p465
    $region38: #{overlap_patch_embed.1} parent=5 // pred_check_branch
      %468 = sbr.rel (%p466) target = $region40
    $region39: #{overlap_patch_embed.1} parent=5 // pred_region
      %s469 = ssub.s32 %s9, 2
      // Predicated region
      $region41: #{overlap_patch_embed.1} parent=39 // pred_check
        %p470 = pneg %p127
      $region42: #{overlap_patch_embed.1} parent=39 // pred_check_branch
        %472 = sbr.rel (%p470) target = $region44
      $region43: #{overlap_patch_embed.1} parent=39 // pred_region
        %s473 = smul.u32 2, %s21
        %p474 = scmp.lt.s32.totalorder %s20, 1
        %s475 = scalar_select %p474, %s20, 1
        %p476 = scmp.lt.s32.totalorder %s473, 1
        %s477 = scalar_select %p476, %s473, 1
        %s478 = smul.addr %s475, 12
        %s479 = sadd.s32 %s477, %s478
        %s480 = smul.addr %s479, 8
        %s481 = scalar_lea.vmem %s3, %s480
      $region44: #{overlap_patch_embed.1} parent=39 // pred_fallthru
        _
    $region40: #{overlap_patch_embed.1} parent=5 // pred_fallthru
      _
  $region6: #{overlap_patch_embed.1} parent=0 // loop_footer
    %s13 = sadd.s32 1, %s9
  $region7: #{overlap_patch_embed.1} parent=0 // loop_footer_branch
    %8 = sbr.rel target = $region3
  $region8: #{overlap_patch_embed.1} parent=0 // loop_exit
    _

</llo_original>
